<compile_context>
chip_gen: v5e
topology: v5e:2x2
jax: 0.10.0
libtpu: 0.0.40
codegen_flags: <defaults>
</compile_context>

<pallas_src>
import functools

import jax
import jax.numpy as jnp
from jax.experimental import pallas as pl
from jax.experimental.pallas import tpu as pltpu

_VEC_ROWS = 8  # packed vector block is always one full (8, lanes) sublane tile


def _static_mlp_kernel(use_bn, inv_b, d_in, x_ref, wv_ref, w2_ref, o_ref):
    """Fused MLP forward.

    x_ref : (B, Dp)        input activations (Dp = D padded to sublane mult.)
    wv_ref: (Dp + 8, Hp)   rows [0, Dp)       : layer-1 weight (pre-transposed)
                           rows [Dp, Dp + 8)  : packed per-layer vectors
                             use_bn: [gamma1, beta1, gamma2, beta2, 0, 0, 0, 0]
                             else  : [b1, b2, 0, ...]
    w2_ref: (Hp, Hp)       layer-2 weight (pre-transposed, lane-padded)
    o_ref : (B, Hp)        lane-dense output
    """
    eps = jnp.float32(1e-5)
    inv_b = jnp.float32(inv_b)

    x = x_ref[...].astype(jnp.float32)
    w1 = wv_ref[:d_in, :]                      # static, sublane-aligned slice
    vecs = wv_ref[d_in:d_in + _VEC_ROWS, :]    # one aligned (8, Hp) tile

    # ---- layer 1: Linear (bias dropped under BN; mean subtraction cancels it)
    h = jnp.dot(x, w1, preferred_element_type=jnp.float32)

    if use_bn:
        g1, be1 = vecs[0:1, :], vecs[1:2, :]
        s1 = jnp.sum(h, axis=0, keepdims=True)
        s2 = jnp.sum(h * h, axis=0, keepdims=True)
        mean = s1 * inv_b
        var = jnp.maximum(s2 * inv_b - mean * mean, 0.0)   # biased batch var
        scale = g1 * jax.lax.rsqrt(var + eps)
        shift = be1 - mean * scale
        h = h * scale + shift
    else:
        h = h + vecs[0:1, :]                               # bias b1

    h = jnp.maximum(h, 0.0)                                # ReLU

    # ---- layer 2: Linear ----
    h2 = jnp.dot(h, w2_ref[...], preferred_element_type=jnp.float32)

    if use_bn:
        g2, be2 = vecs[2:3, :], vecs[3:4, :]
        s1 = jnp.sum(h2, axis=0, keepdims=True)
        s2 = jnp.sum(h2 * h2, axis=0, keepdims=True)
        mean = s1 * inv_b
        var = jnp.maximum(s2 * inv_b - mean * mean, 0.0)
        scale = g2 * jax.lax.rsqrt(var + eps)
        shift = be2 - mean * scale
        h2 = h2 * scale + shift
    else:
        h2 = h2 + vecs[1:2, :]                             # bias b2

    o_ref[...] = jnp.maximum(h2, 0.0).astype(o_ref.dtype)


def _round_up(n, m):
    return ((n + m - 1) // m) * m


def pack_params(params, *, use_bn, lane=128, sublane=8):
    """One-time prep: lane-pad hidden dim to a multiple of 128, sublane-pad the
    input dim, and fold every small per-layer vector into extra rows below w1
    (so the kernel gets exactly 3 inputs)."""
    D, H = params["w1"].shape
    Hp = max(_round_up(H, lane), lane)
    Dp = _round_up(D, sublane)
    pad_h = Hp - H

    w1 = jnp.pad(params["w1"], ((0, Dp - D), (0, pad_h)))
    w2 = jnp.pad(params["w2"], ((0, pad_h), (0, pad_h)))

    if use_bn:
        # b1/b2 are dead under BN (mean subtraction cancels them exactly).
        rows = [params["gamma1"], params["beta1"], params["gamma2"], params["beta2"]]
    else:
        rows = [params["b1"], params["b2"]]
    vecs = jnp.concatenate(rows, axis=0)
    # Pad to a full 8-row sublane tile; pad lanes get gamma/beta/bias = 0 so
    # padded hidden columns stay exactly 0 through BN + ReLU.
    vecs = jnp.pad(vecs, ((0, _VEC_ROWS - vecs.shape[0]), (0, pad_h)))

    wv = jnp.concatenate([w1, vecs], axis=0)               # (Dp + 8, Hp)
    return dict(wv=wv, w2=w2, hidden_dim=H, input_dim=D, padded_input_dim=Dp)


def static_model_forward(static_features, packed, *, use_bn=True, trim=False):
    """StaticModel forward as one fused Pallas kernel.

    static_features: (B, static_input_dim) float32
    packed: output of pack_params(...)

    Returns a lane-padded (B, 128) slab by default (pad columns are exactly 0,
    so downstream consumers can use it directly with no trailing slice op).
    Pass trim=True to get the exact (B, hidden_dim) module output.
    """
    B, D = static_features.shape
    assert D == packed["input_dim"]
    Dp = packed["padded_input_dim"]
    Hp = packed["w2"].shape[1]
    H = packed["hidden_dim"]

    x = static_features
    if Dp != D:   # not hit for D=16; only when D isn't sublane-aligned
        x = jnp.pad(x, ((0, 0), (0, Dp - D)))

    kernel = functools.partial(_static_mlp_kernel, use_bn, 1.0 / B, Dp)

    bytes_accessed = 4 * (x.size + packed["wv"].size + packed["w2"].size + B * Hp)
    cost = pl.CostEstimate(
        flops=2 * B * Hp * (Dp + Hp) + 12 * B * Hp,
        transcendentals=2 * Hp if use_bn else 0,
        bytes_accessed=bytes_accessed,
    )

    vmem = pl.BlockSpec(memory_space=pltpu.MemorySpace.VMEM)  # whole array in VMEM
    out = pl.pallas_call(
        kernel,
        out_shape=jax.ShapeDtypeStruct((B, Hp), static_features.dtype),
        in_specs=[vmem, vmem, vmem],
        out_specs=vmem,
        cost_estimate=cost,
        compiler_params=pltpu.CompilerParams(),
    )(x, packed["wv"], packed["w2"])

    if trim:
        out = out[:, :H]
    return out


def init_params(key, static_input_dim, hidden_dim):
    """Deterministic synthetic params (matches nn.Linear/BatchNorm1d shapes).
    nn.Linear weight is (out, in); we store the transpose (in, out)."""
    k1, k2, k3, k4 = jax.random.split(key, 4)
    scale1 = 1.0 / jnp.sqrt(static_input_dim)
    scale2 = 1.0 / jnp.sqrt(hidden_dim)
    return dict(
        w1=jax.random.uniform(k1, (static_input_dim, hidden_dim), jnp.float32,
                              -scale1, scale1),
        b1=jax.random.uniform(k2, (1, hidden_dim), jnp.float32, -scale1, scale1),
        gamma1=jnp.ones((1, hidden_dim), jnp.float32),
        beta1=jnp.zeros((1, hidden_dim), jnp.float32),
        w2=jax.random.uniform(k3, (hidden_dim, hidden_dim), jnp.float32,
                              -scale2, scale2),
        b2=jax.random.uniform(k4, (1, hidden_dim), jnp.float32, -scale2, scale2),
        gamma2=jnp.ones((1, hidden_dim), jnp.float32),
        beta2=jnp.zeros((1, hidden_dim), jnp.float32),
    )


def _reference_forward(x, p, use_bn=True):
    """Pure-JAX reference mirroring the PyTorch forward (training-mode BN)."""
    eps = 1e-5
    h = x @ p["w1"] + p["b1"]
    if use_bn:
        m = h.mean(0, keepdims=True)
        v = ((h - m) ** 2).mean(0, keepdims=True)
        h = (h - m) / jnp.sqrt(v + eps) * p["gamma1"] + p["beta1"]
    h = jnp.maximum(h, 0.0)
    h2 = h @ p["w2"] + p["b2"]
    if use_bn:
        m2 = h2.mean(0, keepdims=True)
        v2 = ((h2 - m2) ** 2).mean(0, keepdims=True)
        h2 = (h2 - m2) / jnp.sqrt(v2 + eps) * p["gamma2"] + p["beta2"]
    return jnp.maximum(h2, 0.0)


if __name__ == "__main__":
    key = jax.random.PRNGKey(0)
    k_x, k_p = jax.random.split(key)

    batch = 8
    static_input_dim = 16
    scalar_mlp_hidden_dim = 32

    x = jax.random.normal(k_x, (batch, static_input_dim), dtype=jnp.float32)
    params = init_params(k_p, static_input_dim, scalar_mlp_hidden_dim)

    for use_bn in (True, False):   # StaticModel(batch_norm=True / False)
        packed = pack_params(params, use_bn=use_bn)
        out = static_model_forward(x, packed, use_bn=use_bn)   # (B, 128) padded
        out = jax.block_until_ready(out)

        ref = _reference_forward(x, params, use_bn=use_bn)
        assert out.shape == (batch, 128)
        assert jnp.allclose(out[:, :scalar_mlp_hidden_dim], ref,
                            atol=1e-4, rtol=1e-4), \
            f"mismatch vs reference (use_bn={use_bn})"
        assert bool(jnp.all(out[:, scalar_mlp_hidden_dim:] == 0.0)), \
            f"pad lanes not zero (use_bn={use_bn})"

    print("KERNEL_OK")
</pallas_src>

<mosaic_0001>
module attributes {stable_mosaic.version = 11 : i64} {
  func.func @_static_mlp_kernel(%arg0: memref<8x16xf32, #tpu.memory_space<vmem>>, %arg1: memref<24x128xf32, #tpu.memory_space<vmem>>, %arg2: memref<128x128xf32, #tpu.memory_space<vmem>>, %arg3: memref<8x128xf32, #tpu.memory_space<vmem>>) attributes {dimension_semantics = [], scalar_prefetch = 0 : i64, scratch_operands = 0 : i64, tpu.core_type = #tpu.core_type<tc>} {
    %c0 = arith.constant 0 : index
    %c0_0 = arith.constant 0 : index
    %0 = vector.load %arg0[%c0, %c0_0] : memref<8x16xf32, #tpu.memory_space<vmem>>, vector<8x16xf32>
    %c0_1 = arith.constant 0 : index
    %c0_2 = arith.constant 0 : index
    %1 = vector.load %arg1[%c0_1, %c0_2] : memref<24x128xf32, #tpu.memory_space<vmem>>, vector<16x128xf32>
    %c16 = arith.constant 16 : index
    %c0_3 = arith.constant 0 : index
    %2 = vector.load %arg1[%c16, %c0_3] : memref<24x128xf32, #tpu.memory_space<vmem>>, vector<8x128xf32>
    %cst = arith.constant dense<0.000000e+00> : vector<8x128xf32>
    %3 = tpu.matmul %0, %1, %cst {dimension_numbers = #tpu.dot_dimension_numbers<[1], [0], [0], [1], [0, 0, 1, 1], [], []>} : vector<8x16xf32>, vector<16x128xf32>, vector<8x128xf32> -> vector<8x128xf32>
    %4 = vector.extract_strided_slice %2 {offsets = [0, 0], sizes = [1, 128], strides = [1, 1]} : vector<8x128xf32> to vector<1x128xf32>
    %5 = vector.extract_strided_slice %2 {offsets = [1, 0], sizes = [1, 128], strides = [1, 1]} : vector<8x128xf32> to vector<1x128xf32>
    %cst_4 = arith.constant dense<0.000000e+00> : vector<128xf32>
    %6 = vector.multi_reduction <add>, %3, %cst_4 [0] : vector<8x128xf32> to vector<128xf32>
    %7 = vector.shape_cast %6 : vector<128xf32> to vector<1x128xf32>
    %8 = arith.mulf %3, %3 : vector<8x128xf32>
    %cst_5 = arith.constant dense<0.000000e+00> : vector<128xf32>
    %9 = vector.multi_reduction <add>, %8, %cst_5 [0] : vector<8x128xf32> to vector<128xf32>
    %10 = vector.shape_cast %9 : vector<128xf32> to vector<1x128xf32>
    %cst_6 = arith.constant 1.250000e-01 : f32
    %11 = vector.broadcast %cst_6 : f32 to vector<1x128xf32>
    %12 = arith.mulf %7, %11 : vector<1x128xf32>
    %cst_7 = arith.constant 1.250000e-01 : f32
    %13 = vector.broadcast %cst_7 : f32 to vector<1x128xf32>
    %14 = arith.mulf %10, %13 : vector<1x128xf32>
    %15 = arith.mulf %12, %12 : vector<1x128xf32>
    %16 = arith.subf %14, %15 : vector<1x128xf32>
    %cst_8 = arith.constant 0.000000e+00 : f32
    %17 = vector.broadcast %cst_8 : f32 to vector<1x128xf32>
    %18 = arith.maximumf %16, %17 : vector<1x128xf32>
    %cst_9 = arith.constant 9.99999974E-6 : f32
    %19 = vector.broadcast %cst_9 : f32 to vector<1x128xf32>
    %20 = arith.addf %18, %19 : vector<1x128xf32>
    %21 = math.rsqrt %20 : vector<1x128xf32>
    %22 = arith.mulf %4, %21 : vector<1x128xf32>
    %23 = arith.mulf %12, %22 : vector<1x128xf32>
    %24 = arith.subf %5, %23 : vector<1x128xf32>
    %25 = vector.broadcast %22 : vector<1x128xf32> to vector<8x128xf32>
    %26 = arith.mulf %3, %25 : vector<8x128xf32>
    %27 = vector.broadcast %24 : vector<1x128xf32> to vector<8x128xf32>
    %28 = arith.addf %26, %27 : vector<8x128xf32>
    %cst_10 = arith.constant 0.000000e+00 : f32
    %29 = vector.broadcast %cst_10 : f32 to vector<8x128xf32>
    %30 = arith.maximumf %28, %29 : vector<8x128xf32>
    %c0_11 = arith.constant 0 : index
    %c0_12 = arith.constant 0 : index
    %31 = vector.load %arg2[%c0_11, %c0_12] : memref<128x128xf32, #tpu.memory_space<vmem>>, vector<128x128xf32>
    %cst_13 = arith.constant dense<0.000000e+00> : vector<8x128xf32>
    %32 = tpu.matmul %30, %31, %cst_13 {dimension_numbers = #tpu.dot_dimension_numbers<[1], [0], [0], [1], [0, 0, 1, 1], [], []>} : vector<8x128xf32>, vector<128x128xf32>, vector<8x128xf32> -> vector<8x128xf32>
    %33 = vector.extract_strided_slice %2 {offsets = [2, 0], sizes = [1, 128], strides = [1, 1]} : vector<8x128xf32> to vector<1x128xf32>
    %34 = vector.extract_strided_slice %2 {offsets = [3, 0], sizes = [1, 128], strides = [1, 1]} : vector<8x128xf32> to vector<1x128xf32>
    %cst_14 = arith.constant dense<0.000000e+00> : vector<128xf32>
    %35 = vector.multi_reduction <add>, %32, %cst_14 [0] : vector<8x128xf32> to vector<128xf32>
    %36 = vector.shape_cast %35 : vector<128xf32> to vector<1x128xf32>
    %37 = arith.mulf %32, %32 : vector<8x128xf32>
    %cst_15 = arith.constant dense<0.000000e+00> : vector<128xf32>
    %38 = vector.multi_reduction <add>, %37, %cst_15 [0] : vector<8x128xf32> to vector<128xf32>
    %39 = vector.shape_cast %38 : vector<128xf32> to vector<1x128xf32>
    %cst_16 = arith.constant 1.250000e-01 : f32
    %40 = vector.broadcast %cst_16 : f32 to vector<1x128xf32>
    %41 = arith.mulf %36, %40 : vector<1x128xf32>
    %cst_17 = arith.constant 1.250000e-01 : f32
    %42 = vector.broadcast %cst_17 : f32 to vector<1x128xf32>
    %43 = arith.mulf %39, %42 : vector<1x128xf32>
    %44 = arith.mulf %41, %41 : vector<1x128xf32>
    %45 = arith.subf %43, %44 : vector<1x128xf32>
    %cst_18 = arith.constant 0.000000e+00 : f32
    %46 = vector.broadcast %cst_18 : f32 to vector<1x128xf32>
    %47 = arith.maximumf %45, %46 : vector<1x128xf32>
    %cst_19 = arith.constant 9.99999974E-6 : f32
    %48 = vector.broadcast %cst_19 : f32 to vector<1x128xf32>
    %49 = arith.addf %47, %48 : vector<1x128xf32>
    %50 = math.rsqrt %49 : vector<1x128xf32>
    %51 = arith.mulf %33, %50 : vector<1x128xf32>
    %52 = arith.mulf %41, %51 : vector<1x128xf32>
    %53 = arith.subf %34, %52 : vector<1x128xf32>
    %54 = vector.broadcast %51 : vector<1x128xf32> to vector<8x128xf32>
    %55 = arith.mulf %32, %54 : vector<8x128xf32>
    %56 = vector.broadcast %53 : vector<1x128xf32> to vector<8x128xf32>
    %57 = arith.addf %55, %56 : vector<8x128xf32>
    %cst_20 = arith.constant 0.000000e+00 : f32
    %58 = vector.broadcast %cst_20 : f32 to vector<8x128xf32>
    %59 = arith.maximumf %57, %58 : vector<8x128xf32>
    %c0_21 = arith.constant 0 : index
    %c0_22 = arith.constant 0 : index
    %60 = vector.load %arg3[%c0_21, %c0_22] : memref<8x128xf32, #tpu.memory_space<vmem>>, vector<8x128xf32>
    tpu.vector_store %arg3[%c0_21, %c0_22], %59 {strides = array<i32>} : memref<8x128xf32, #tpu.memory_space<vmem>>, vector<8x128xf32>,
    return
  }
}

</mosaic_0001>

<llo_original>
// kernel: tpu_custom_call.1
$region0: #{tpu_custom_call.1}
  #allocation0 [shape = 'u32[]', space=smem, size = 0x4, offset = 0x4, fixed_abs, tag = 'smem constant byte address 0x4 - core index']
  #allocation1 [shape = 'u32[72,128]{1,0:T(1,128)}', space=vmem, size = 0x9000, scoped, tag = 'internal scratch']
  %s0 = inlined_call_operand.hbm [shape: f32[8,16], index: 0, kind: input, shape index: {}]
  %s1 = inlined_call_operand.hbm [shape: f32[24,128], index: 1, kind: input, shape index: {}]
  %s2 = inlined_call_operand.hbm [shape: f32[128,128], index: 2, kind: input, shape index: {}]
  %s3 = inlined_call_operand.hbm [shape: f32[8,128], index: 3, kind: output, shape index: {}]
  %s4 = sld [smem:[#allocation0]]
  $region34: #{tpu_custom_call.1} parent=0
    _
  %s6 = ssub.s32 1, %s4
  %s7 = scalar_select 0, %s6, %s4
  $region1: #{tpu_custom_call.1} parent=0
    #allocation2 [shape = 'u8[4096]{0}', space=vmem, size = 0x1000, scoped, tag = 'input window, operand 0, single buffered']
    #allocation3 [shape = 's32[1]{0}', space=sflag, size = 0x4, scoped, tag = 'scoped memory for tpu_custom_call.1']
    #allocation4 [shape = 's32[1]{0}', space=sflag, size = 0x4, scoped, tag = 'scoped memory for tpu_custom_call.1']
    #allocation5 [shape = 'u8[12288]{0}', space=vmem, size = 0x3000, scoped, tag = 'input window, operand 1, single buffered']
    #allocation6 [shape = 's32[1]{0}', space=sflag, size = 0x4, scoped, tag = 'scoped memory for tpu_custom_call.1']
    #allocation7 [shape = 'u8[65536]{0}', space=vmem, size = 0x10000, scoped, tag = 'input window, operand 2, single buffered']
    #allocation8 [shape = 'u8[4096]{0}', space=vmem, size = 0x1000, scoped, tag = 'output window, operand 0, single buffered']
    %8 = vsyncpa [#allocation3], 0
    %9 = vsyncpa [#allocation6], 0
    %10 = vsyncpa [#allocation4], 0
    // Predicated region
    $region2: #{tpu_custom_call.1} parent=1 // pred_check
      _
    $region3: #{tpu_custom_call.1} parent=1 // pred_check_branch
      %12 = sbr.rel (0) target = $region5
    $region4: #{tpu_custom_call.1} parent=1 // pred_region
      %14 = vsyncadd [#allocation3], 0
      %s16 = sshll.u32 %s0, 4
      %s17 = int_to_ptr.hbm [resolvable:$true] %s16
      %s18 = sshll.u32 [#allocation2], 4
      %s19 = int_to_ptr.vmem [resolvable:$true] %s18
      %21 = dma.hbm_to_vmem [thread:$0]  %s17, 128, %s19, [#allocation3]
    $region5: #{tpu_custom_call.1} parent=1 // pred_fallthru
      _
    // Predicated region
    $region6: #{tpu_custom_call.1} parent=1 // pred_check
      _
    $region7: #{tpu_custom_call.1} parent=1 // pred_check_branch
      %23 = sbr.rel (0) target = $region9
    $region8: #{tpu_custom_call.1} parent=1 // pred_region
      %25 = vsyncadd [#allocation6], 0
      %s26 = sshll.u32 %s1, 4
      %s27 = int_to_ptr.hbm [resolvable:$true] %s26
      %s28 = sshll.u32 [#allocation5], 4
      %s29 = int_to_ptr.vmem [resolvable:$true] %s28
      %34 = dma.hbm_to_vmem [thread:$0]  %s27, 384, %s29, [#allocation6], 128, 128, 8
    $region9: #{tpu_custom_call.1} parent=1 // pred_fallthru
      _
    // Predicated region
    $region10: #{tpu_custom_call.1} parent=1 // pred_check
      _
    $region11: #{tpu_custom_call.1} parent=1 // pred_check_branch
      %36 = sbr.rel (0) target = $region13
    $region12: #{tpu_custom_call.1} parent=1 // pred_region
      %38 = vsyncadd [#allocation6], 0
      %s39 = sshll.u32 %s2, 4
      %s40 = int_to_ptr.hbm [resolvable:$true] %s39
      %s41 = sshll.u32 [#allocation7], 4
      %s42 = int_to_ptr.vmem [resolvable:$true] %s41
      %47 = dma.hbm_to_vmem [thread:$0]  %s40, 2048, %s42, [#allocation6], 128, 128, 8
    $region13: #{tpu_custom_call.1} parent=1 // pred_fallthru
      _
    // Predicated region
    $region14: #{tpu_custom_call.1} parent=1 // pred_check
      _
    $region15: #{tpu_custom_call.1} parent=1 // pred_check_branch
      %49 = sbr.rel (0) target = $region17
    $region16: #{tpu_custom_call.1} parent=1 // pred_region
      %51 = dma.done [#allocation3], 128
    $region17: #{tpu_custom_call.1} parent=1 // pred_fallthru
      _
    // Predicated region
    $region18: #{tpu_custom_call.1} parent=1 // pred_check
      _
    $region19: #{tpu_custom_call.1} parent=1 // pred_check_branch
      %53 = sbr.rel (0) target = $region21
    $region20: #{tpu_custom_call.1} parent=1 // pred_region
      %55 = dma.done [#allocation6], 384
    $region21: #{tpu_custom_call.1} parent=1 // pred_fallthru
      _
    // Predicated region
    $region22: #{tpu_custom_call.1} parent=1 // pred_check
      _
    $region23: #{tpu_custom_call.1} parent=1 // pred_check_branch
      %57 = sbr.rel (0) target = $region25
    $region24: #{tpu_custom_call.1} parent=1 // pred_region
      %59 = dma.done [#allocation6], 2048
    $region25: #{tpu_custom_call.1} parent=1 // pred_fallthru
      _
    %v60 = vld [vmem:[#allocation2] sm:$0xff]
    %v61 = vld [vmem:[#allocation5] sm:$0xff]
    %v62 = vld [vmem:[#allocation5 + $0x8] sm:$0xff]
    %v63 = vld [vmem:[#allocation5 + $0x10] sm:$0xff]
    %vm64 = vcmask 130048
    %v66 = vsel %vm64, %v60, 0
    %68 = vmatpush.msra.mxu0 0.0
    %69 = vmatpush.msra.mxu0 0.0
    %70 = vmatpush.msra.mxu0 0.0
    %71 = vmatpush.msra.mxu0 0.0
    %72 = vmatpush.msra.mxu0 0.0
    %73 = vmatpush.msra.mxu0 0.0
    %74 = vmatpush.msra.mxu0 0.0
    %75 = vmatpush.msra.mxu0 0.0
    %76 = vmatpush.msra.mxu0 0.0
    %77 = vmatpush.msra.mxu0 0.0
    %78 = vmatpush.msra.mxu0 0.0
    %79 = vmatpush.msra.mxu0 0.0
    %80 = vmatpush.msra.mxu0 0.0
    %81 = vmatpush.msra.mxu0 0.0
    %82 = vmatpush.msra.mxu0 %v62
    %83 = vmatpush.msra.mxu0 %v61
    %84 = vmatmul.f32.gmra.mxu0 %v66
    %v85 = vpop.f32.mrf.mxu0
    %v86 = vadd.f32 0.0, %v85
    %87 = vdwg.mxu0
    %v88 = vrot.slane %v86, 4
    %v89 = vadd.f32 %v86, %v88
    %v90 = vrot.slane %v89, 2
    %v91 = vadd.f32 %v89, %v90
    %v92 = vrot.slane %v91, 1
    %v93 = vadd.f32 %v91, %v92
    %v94 = vmul.f32 %v86, %v86
    %v95 = vrot.slane %v94, 4
    %v96 = vadd.f32 %v94, %v95
    %v97 = vrot.slane %v96, 2
    %v98 = vadd.f32 %v96, %v97
    %v99 = vrot.slane %v98, 1
    %v100 = vadd.f32 %v98, %v99
    %v101 = vmul.f32 %v93, 0.125
    %v102 = vmul.f32 %v100, 0.125
    %v103 = vmul.f32 %v101, %v101
    %v104 = vsub.f32 %v102, %v103
    %v105 = vmax.f32 %v104, 0.0
    %v106 = vadd.f32 %v105, 1e-05
    %v107 = vrsqrt.pop %v106
    %v108 = vmul.f32 %v107, %v106
    %v109 = vmul.f32 %v108, %v107
    %v110 = vmul.f32 0.5, %v109
    %v111 = vsub.f32 1.5, %v110
    %v112 = vmul.f32 %v107, %v111
    %vm113 = vweird.f32 %v106
    %vm114 = vweird.f32 %v107
    %vm115 = vmor %vm113, %vm114
    %v116 = vsel %vm115, %v107, %v112
    %v117 = vmul.f32 %v63, %v116
    %v118 = vmul.f32 %v101, %v117
    %v120 = vrot.slane %v118, 7
    %v122 = vsub.f32 %v63, %v120
    %v123 = vperm.slane %v117, 0
    %v124 = vmul.f32 %v86, %v123
    %v125 = vperm.slane %v122, 1
    %v126 = vadd.f32 %v124, %v125
    %v127 = vmax.f32 %v126, 0.0
    %v128 = vld [vmem:[#allocation7] sm:$0xff]
    %v129 = vld [vmem:[#allocation7 + $0x8] sm:$0xff]
    %v130 = vld [vmem:[#allocation7 + $0x10] sm:$0xff]
    %v131 = vld [vmem:[#allocation7 + $0x18] sm:$0xff]
    %v132 = vld [vmem:[#allocation7 + $0x20] sm:$0xff]
    %v133 = vld [vmem:[#allocation7 + $0x28] sm:$0xff]
    %v134 = vld [vmem:[#allocation7 + $0x30] sm:$0xff]
    %v135 = vld [vmem:[#allocation7 + $0x38] sm:$0xff]
    %v136 = vld [vmem:[#allocation7 + $0x40] sm:$0xff]
    %v137 = vld [vmem:[#allocation7 + $0x48] sm:$0xff]
    %v138 = vld [vmem:[#allocation7 + $0x50] sm:$0xff]
    %v139 = vld [vmem:[#allocation7 + $0x58] sm:$0xff]
    %v140 = vld [vmem:[#allocation7 + $0x60] sm:$0xff]
    %v141 = vld [vmem:[#allocation7 + $0x68] sm:$0xff]
    %v142 = vld [vmem:[#allocation7 + $0x70] sm:$0xff]
    %v143 = vld [vmem:[#allocation7 + $0x78] sm:$0xff]
    %144 = vmatpush.msra.mxu0 %v143
    %145 = vmatpush.msra.mxu0 %v142
    %146 = vmatpush.msra.mxu0 %v141
    %147 = vmatpush.msra.mxu0 %v140
    %148 = vmatpush.msra.mxu0 %v139
    %149 = vmatpush.msra.mxu0 %v138
    %150 = vmatpush.msra.mxu0 %v137
    %151 = vmatpush.msra.mxu0 %v136
    %152 = vmatpush.msra.mxu0 %v135
    %153 = vmatpush.msra.mxu0 %v134
    %154 = vmatpush.msra.mxu0 %v133
    %155 = vmatpush.msra.mxu0 %v132
    %156 = vmatpush.msra.mxu0 %v131
    %157 = vmatpush.msra.mxu0 %v130
    %158 = vmatpush.msra.mxu0 %v129
    %159 = vmatpush.msra.mxu0 %v128
    %160 = vmatmul.f32.gmra.mxu0 %v127
    %v161 = vpop.f32.mrf.mxu0
    %v162 = vadd.f32 0.0, %v161
    %163 = vdwg.mxu0
    %v164 = vrot.slane %v162, 4
    %v165 = vadd.f32 %v162, %v164
    %v166 = vrot.slane %v165, 2
    %v167 = vadd.f32 %v165, %v166
    %v168 = vrot.slane %v167, 1
    %v169 = vadd.f32 %v167, %v168
    %v170 = vmul.f32 %v162, %v162
    %v171 = vrot.slane %v170, 4
    %v172 = vadd.f32 %v170, %v171
    %v173 = vrot.slane %v172, 2
    %v174 = vadd.f32 %v172, %v173
    %v175 = vrot.slane %v174, 1
    %v176 = vadd.f32 %v174, %v175
    %v177 = vmul.f32 %v169, 0.125
    %v178 = vmul.f32 %v176, 0.125
    %v179 = vmul.f32 %v177, %v177
    %v180 = vsub.f32 %v178, %v179
    %v181 = vmax.f32 %v180, 0.0
    %v182 = vadd.f32 %v181, 1e-05
    %v183 = vrsqrt.pop %v182
    %v184 = vmul.f32 %v183, %v182
    %v185 = vmul.f32 %v184, %v183
    %v186 = vmul.f32 0.5, %v185
    %v187 = vsub.f32 1.5, %v186
    %v188 = vmul.f32 %v183, %v187
    %vm189 = vweird.f32 %v182
    %vm190 = vweird.f32 %v183
    %vm191 = vmor %vm189, %vm190
    %v192 = vsel %vm191, %v183, %v188
    %v193 = vmul.f32 %v63, %v192
    %v194 = vmul.f32 %v177, %v193
    %v196 = vrot.slane %v194, 7
    %v198 = vsub.f32 %v63, %v196
    %v199 = vperm.slane %v193, 2
    %v200 = vmul.f32 %v162, %v199
    %v201 = vperm.slane %v198, 3
    %v202 = vadd.f32 %v200, %v201
    %v203 = vmax.f32 %v202, 0.0
    %204 = vst [vmem:[#allocation8] sm:$0xff] %v203
    // Predicated region
    $region26: #{tpu_custom_call.1} parent=1 // pred_check
      _
    $region27: #{tpu_custom_call.1} parent=1 // pred_check_branch
      %206 = sbr.rel (0) target = $region29
    $region28: #{tpu_custom_call.1} parent=1 // pred_region
      %208 = vsyncadd [#allocation4], 0
      %s210 = sshll.u32 [#allocation8], 4
      %s211 = int_to_ptr.vmem [resolvable:$true] %s210
      %s212 = sshll.u32 %s3, 4
      %s213 = int_to_ptr.hbm [resolvable:$true] %s212
      %215 = dma.vmem_to_hbm [thread:$0]  %s211, 128, %s213, [#allocation4]
    $region29: #{tpu_custom_call.1} parent=1 // pred_fallthru
      _
    // Predicated region
    $region30: #{tpu_custom_call.1} parent=1 // pred_check
      _
    $region31: #{tpu_custom_call.1} parent=1 // pred_check_branch
      %217 = sbr.rel (0) target = $region33
    $region32: #{tpu_custom_call.1} parent=1 // pred_region
      %219 = dma.done [#allocation4], 128
    $region33: #{tpu_custom_call.1} parent=1 // pred_fallthru
      _
    %220 = vsyncpa [#allocation3], 1
    %221 = vsyncpa [#allocation6], 1
    %222 = vsyncpa [#allocation4], 1

</llo_original>
